<compile_context>
chip_gen: v6e
topology: v6e:2x2x1
jax: 0.10.0
libtpu: 0.0.40
codegen_flags: <defaults>
</compile_context>

<pallas_src>
import jax
import jax.numpy as jnp
from jax.experimental import pallas as pl
from jax.experimental.pallas import tpu as pltpu

LANE = 128       # vreg lane width
BF16_SUB = 16    # bf16 sublane tile height (rows per packed tile)


def _round_up(n, m):
    return ((n + m - 1) // m) * m


def init_params(key, input_dim, hidden_units, output_dim):
    """Deterministic parameter init (uniform, PyTorch-Linear-style fan_in bound).

    Weights are stored (in_features, out_features) so y = x @ W + b.
    """
    dims = [input_dim] + list(hidden_units) + [output_dim]
    params = []
    for i in range(len(dims) - 1):
        fan_in, fan_out = dims[i], dims[i + 1]
        key, kw, kb = jax.random.split(key, 3)
        bound = 1.0 / jnp.sqrt(fan_in)
        w = jax.random.uniform(kw, (fan_in, fan_out), jnp.float32, -bound, bound)
        b = jax.random.uniform(kb, (1, fan_out), jnp.float32, -bound, bound)
        params += [w, b]
    return params


def pack_params(params):
    """Pack (W1,b1,W2,b2,W3,b3) into one zero-padded (rows, 128) bf16 slab.

    Done once at init. Every block is padded to 128 lanes and a multiple of 16
    rows (bf16 sublane tile), so all in-kernel slices are tile-aligned and the
    zero padding is mathematically inert (ReLU(0)=0, 0-rows contribute 0).
    """
    w1, b1, w2, b2, w3, b3 = params
    in_dim = w1.shape[0]
    out_dim = w3.shape[1]

    # Single-lane-group assumptions; fail loudly for larger configs.
    assert in_dim <= LANE, "concatenated input dim must be <= 128"
    assert w1.shape[1] <= LANE and w2.shape[1] <= LANE, "hidden dims must be <= 128"
    assert out_dim <= LANE, "output dim must be <= 128"

    def pad(mat, rows):
        r, c = mat.shape
        rows = _round_up(rows, BF16_SUB)
        return jnp.pad(mat.astype(jnp.float32),
                       ((0, rows - r), (0, LANE - c))).astype(jnp.bfloat16)

    names = ["w1", "b1", "w2", "b2", "w3", "b3"]
    blocks = [pad(w1, LANE), pad(b1, BF16_SUB),
              pad(w2, LANE), pad(b2, BF16_SUB),
              pad(w3, LANE), pad(b3, BF16_SUB)]

    offsets, row = {}, 0
    for name, blk in zip(names, blocks):
        offsets[name] = row
        row += blk.shape[0]

    slab = jnp.concatenate(blocks, axis=0)   # (432, 128) bf16, ~108 KiB
    return slab, offsets, in_dim, out_dim


def _make_kernel(off):
    """Kernel closure over the (static) slab layout."""

    def mlp_kernel(xin_ref, p_ref, o_ref):
        xin = xin_ref[...]                                   # (1, 128) bf16, x||a padded

        # Static, 16-row-aligned slices into the resident parameter slab.
        w1 = p_ref[off["w1"]:off["w1"] + LANE, :]            # (128, 128) bf16
        b1 = p_ref[off["b1"]:off["b1"] + 1, :].astype(jnp.float32)
        w2 = p_ref[off["w2"]:off["w2"] + LANE, :]            # (128, 128) bf16
        b2 = p_ref[off["b2"]:off["b2"] + 1, :].astype(jnp.float32)
        w3 = p_ref[off["w3"]:off["w3"] + LANE, :]            # (128, 128) bf16
        b3 = p_ref[off["b3"]:off["b3"] + 1, :].astype(jnp.float32)

        # Layer 1: torch.cat([x, a]) @ W1 is one bf16 MXU pass (f32 accumulate).
        h1 = jnp.dot(xin, w1, preferred_element_type=jnp.float32) + b1
        h1 = jnp.maximum(h1, 0.0)                            # ReLU in f32 (VPU)

        h2 = jnp.dot(h1.astype(jnp.bfloat16), w2,
                     preferred_element_type=jnp.float32) + b2
        h2 = jnp.maximum(h2, 0.0)                            # ReLU in f32 (VPU)

        out = jnp.dot(h2.astype(jnp.bfloat16), w3,
                      preferred_element_type=jnp.float32) + b3
        o_ref[...] = out.astype(o_ref.dtype)                 # lane-dense (1, 128)

    return mlp_kernel


def make_forward(offsets, in_dim, out_dim, slab_nbytes):
    """Build the jitted forward: flatten/concat/pad, one Pallas call, slice."""
    kernel = _make_kernel(offsets)
    vmem = pl.BlockSpec(memory_space=pltpu.MemorySpace.VMEM)

    # Three (1,128)x(128,128) bf16 dots; slab + activation in, padded row out.
    cost = pl.CostEstimate(
        flops=2 * LANE * LANE * 3,
        transcendentals=0,
        bytes_accessed=slab_nbytes + LANE * 2 + LANE * 4,
    )

    @jax.jit
    def forward(x, a, slab):
        x_flat = jnp.reshape(x, (1, -1)).astype(jnp.float32)   # x.view(1, -1)
        a_flat = jnp.reshape(a, (1, -1)).astype(jnp.float32)   # a.view(1, -1)
        xin = jnp.concatenate([x_flat, a_flat], axis=1)        # (1, in_dim)
        xin = jnp.pad(xin, ((0, 0), (0, LANE - in_dim)))       # (1, 128) lane-dense
        xin = xin.astype(jnp.bfloat16)

        out_pad = pl.pallas_call(
            kernel,
            out_shape=jax.ShapeDtypeStruct((1, LANE), jnp.float32),
            in_specs=[vmem, vmem],
            out_specs=vmem,
            cost_estimate=cost,
        )(xin, slab)

        return out_pad[:, :out_dim]                            # (1, out_dim)

    return forward


if __name__ == "__main__":
    key = jax.random.PRNGKey(0)
    k_x, k_a, k_p = jax.random.split(key, 3)

    # Small example shapes: x flattens to 32 elems, a to 8 -> input_dim = 40.
    x = jax.random.normal(k_x, (2, 4, 4), jnp.float32)
    a = jax.random.normal(k_a, (8,), jnp.float32)

    input_dim = x.size + a.size          # 40
    hidden_units = [16, 8]               # default 'linear_hidden_units'
    output_dim = 4

    params = init_params(k_p, input_dim, hidden_units, output_dim)
    slab, offsets, in_dim, out_dim = pack_params(params)

    forward = make_forward(offsets, in_dim, out_dim, slab.size * slab.dtype.itemsize)

    out = forward(x, a, slab)
    jax.block_until_ready(out)

    # --- Reference 1: mimic the kernel's bf16-weight / f32-accumulate math.
    w1, b1, w2, b2, w3, b3 = params
    xc = jnp.concatenate([x.reshape(1, -1), a.reshape(1, -1)], axis=1)

    def q(m):  # bf16 quantize (matches slab storage)
        return m.astype(jnp.bfloat16)

    r = jnp.dot(q(xc), q(w1), preferred_element_type=jnp.float32) + q(b1).astype(jnp.float32)
    r = jnp.maximum(r, 0.0)
    r = jnp.dot(q(r), q(w2), preferred_element_type=jnp.float32) + q(b2).astype(jnp.float32)
    r = jnp.maximum(r, 0.0)
    ref_bf16 = jnp.dot(q(r), q(w3), preferred_element_type=jnp.float32) + q(b3).astype(jnp.float32)

    # --- Reference 2: original full-f32 semantics (loose tolerance: bf16 weights).
    ref_f32 = jnp.maximum(xc @ w1 + b1, 0.0)
    ref_f32 = jnp.maximum(ref_f32 @ w2 + b2, 0.0)
    ref_f32 = ref_f32 @ w3 + b3

    assert out.shape == (1, output_dim)
    assert jnp.allclose(out, ref_bf16, atol=2e-3, rtol=2e-3)
    assert jnp.allclose(out, ref_f32, atol=5e-2, rtol=5e-2)

    print("KERNEL_OK")
</pallas_src>

<mosaic_0001>
module attributes {stable_mosaic.version = 11 : i64} {
  func.func @mlp_kernel(%arg0: memref<1x128xbf16, #tpu.memory_space<vmem>>, %arg1: memref<432x128xbf16, #tpu.memory_space<vmem>>, %arg2: memref<1x128xf32, #tpu.memory_space<vmem>>) attributes {dimension_semantics = [], scalar_prefetch = 0 : i64, scratch_operands = 0 : i64, tpu.core_type = #tpu.core_type<tc>} {
    %c0 = arith.constant 0 : index
    %c0_0 = arith.constant 0 : index
    %0 = vector.load %arg0[%c0, %c0_0] : memref<1x128xbf16, #tpu.memory_space<vmem>>, vector<1x128xbf16>
    %c0_1 = arith.constant 0 : index
    %c0_2 = arith.constant 0 : index
    %1 = vector.load %arg1[%c0_1, %c0_2] : memref<432x128xbf16, #tpu.memory_space<vmem>>, vector<128x128xbf16>
    %c128 = arith.constant 128 : index
    %c0_3 = arith.constant 0 : index
    %2 = vector.load %arg1[%c128, %c0_3] : memref<432x128xbf16, #tpu.memory_space<vmem>>, vector<1x128xbf16>
    %3 = arith.extf %2 : vector<1x128xbf16> to vector<1x128xf32>
    %c144 = arith.constant 144 : index
    %c0_4 = arith.constant 0 : index
    %4 = vector.load %arg1[%c144, %c0_4] : memref<432x128xbf16, #tpu.memory_space<vmem>>, vector<128x128xbf16>
    %c272 = arith.constant 272 : index
    %c0_5 = arith.constant 0 : index
    %5 = vector.load %arg1[%c272, %c0_5] : memref<432x128xbf16, #tpu.memory_space<vmem>>, vector<1x128xbf16>
    %6 = arith.extf %5 : vector<1x128xbf16> to vector<1x128xf32>
    %c288 = arith.constant 288 : index
    %c0_6 = arith.constant 0 : index
    %7 = vector.load %arg1[%c288, %c0_6] : memref<432x128xbf16, #tpu.memory_space<vmem>>, vector<128x128xbf16>
    %c416 = arith.constant 416 : index
    %c0_7 = arith.constant 0 : index
    %8 = vector.load %arg1[%c416, %c0_7] : memref<432x128xbf16, #tpu.memory_space<vmem>>, vector<1x128xbf16>
    %9 = arith.extf %8 : vector<1x128xbf16> to vector<1x128xf32>
    %cst = arith.constant dense<0.000000e+00> : vector<1x128xf32>
    %10 = tpu.matmul %0, %1, %cst {dimension_numbers = #tpu.dot_dimension_numbers<[1], [0], [0], [1], [0, 0, 1, 1], [], []>} : vector<1x128xbf16>, vector<128x128xbf16>, vector<1x128xf32> -> vector<1x128xf32>
    %11 = arith.addf %10, %3 : vector<1x128xf32>
    %cst_8 = arith.constant 0.000000e+00 : f32
    %12 = vector.broadcast %cst_8 : f32 to vector<1x128xf32>
    %13 = arith.maximumf %11, %12 : vector<1x128xf32>
    %14 = arith.truncf %13 : vector<1x128xf32> to vector<1x128xbf16>
    %cst_9 = arith.constant dense<0.000000e+00> : vector<1x128xf32>
    %15 = tpu.matmul %14, %4, %cst_9 {dimension_numbers = #tpu.dot_dimension_numbers<[1], [0], [0], [1], [0, 0, 1, 1], [], []>} : vector<1x128xbf16>, vector<128x128xbf16>, vector<1x128xf32> -> vector<1x128xf32>
    %16 = arith.addf %15, %6 : vector<1x128xf32>
    %cst_10 = arith.constant 0.000000e+00 : f32
    %17 = vector.broadcast %cst_10 : f32 to vector<1x128xf32>
    %18 = arith.maximumf %16, %17 : vector<1x128xf32>
    %19 = arith.truncf %18 : vector<1x128xf32> to vector<1x128xbf16>
    %cst_11 = arith.constant dense<0.000000e+00> : vector<1x128xf32>
    %20 = tpu.matmul %19, %7, %cst_11 {dimension_numbers = #tpu.dot_dimension_numbers<[1], [0], [0], [1], [0, 0, 1, 1], [], []>} : vector<1x128xbf16>, vector<128x128xbf16>, vector<1x128xf32> -> vector<1x128xf32>
    %21 = arith.addf %20, %9 : vector<1x128xf32>
    %c0_12 = arith.constant 0 : index
    %c0_13 = arith.constant 0 : index
    %22 = vector.load %arg2[%c0_12, %c0_13] : memref<1x128xf32, #tpu.memory_space<vmem>>, vector<1x128xf32>
    tpu.vector_store %arg2[%c0_12, %c0_13], %21 {strides = array<i32>} : memref<1x128xf32, #tpu.memory_space<vmem>>, vector<1x128xf32>,
    return
  }
}

</mosaic_0001>

<llo_original>
// kernel: forward.1
$region0: #{forward.1}
  #allocation0 [shape = 'u32[]', space=smem, size = 0x4, offset = 0x4, fixed_abs, tag = 'smem constant byte address 0x4 - core index']
  #allocation1 [shape = 'u32[144,128]{1,0:T(1,128)}', space=vmem, size = 0x12000, scoped, tag = 'internal scratch']
  %s0 = inlined_call_operand.vmem [shape: bf16[1,128], index: 0, kind: input, shape index: {}]
  %s1 = inlined_call_operand.hbm [shape: bf16[432,128], index: 1, kind: input, shape index: {}]
  %s2 = inlined_call_operand.hbm [shape: f32[1,128], index: 2, kind: output, shape index: {}]
  %s3 = sld [smem:[#allocation0]]
  $region22: #{forward.1} parent=0
    _
  %s5 = ssub.s32 1, %s3
  %s6 = scalar_select 0, %s5, %s3
  $region1: #{forward.1} parent=0
    #allocation2 [shape = 'u8[110592]{0}', space=vmem, size = 0x1b000, scoped, tag = 'input window, operand 1, single buffered']
    #allocation3 [shape = 's32[1]{0}', space=sflag, size = 0x4, scoped, tag = 'scoped memory for forward.1']
    #allocation4 [shape = 's32[1]{0}', space=sflag, size = 0x4, scoped, tag = 'scoped memory for forward.1']
    #allocation5 [shape = 'u8[512]{0}', space=vmem, size = 0x400, scoped, tag = 'output window, operand 0, single buffered']
    %7 = vsyncpa [#allocation3], 0
    %8 = vsyncpa [#allocation4], 0
    // Predicated region
    $region2: #{forward.1} parent=1 // pred_check
      _
    $region3: #{forward.1} parent=1 // pred_check_branch
      %10 = sbr.rel (0) target = $region5
    $region4: #{forward.1} parent=1 // pred_region
      _
    $region5: #{forward.1} parent=1 // pred_fallthru
      _
    // Predicated region
    $region6: #{forward.1} parent=1 // pred_check
      _
    $region7: #{forward.1} parent=1 // pred_check_branch
      %12 = sbr.rel (0) target = $region9
    $region8: #{forward.1} parent=1 // pred_region
      %s14 = ssub.s32 3456, 3456
      %15 = vsyncadd [#allocation3], %s14
      %s16 = sshll.u32 [#allocation2], 4
      %s17 = int_to_ptr.vmem [resolvable:$true] %s16
      %22 = dma.hbm_to_vmem [thread:$0]  %s1, 3456, %s17, [#allocation3], 64, 64, 4
    $region9: #{forward.1} parent=1 // pred_fallthru
      _
    // Predicated region
    $region10: #{forward.1} parent=1 // pred_check
      _
    $region11: #{forward.1} parent=1 // pred_check_branch
      %24 = sbr.rel (0) target = $region13
    $region12: #{forward.1} parent=1 // pred_region
      %25 = dma.done [#allocation3], 3456
    $region13: #{forward.1} parent=1 // pred_fallthru
      _
    %v27 = vld [vmem:[%s0] sm:$0x1]
    %v28 = vld [vmem:[#allocation2] sm:$0xf]
    %v29 = vld [vmem:[#allocation2 + $0x4] sm:$0xf]
    %v30 = vld [vmem:[#allocation2 + $0x8] sm:$0xf]
    %v31 = vld [vmem:[#allocation2 + $0xc] sm:$0xf]
    %v32 = vld [vmem:[#allocation2 + $0x10] sm:$0xf]
    %v33 = vld [vmem:[#allocation2 + $0x14] sm:$0xf]
    %v34 = vld [vmem:[#allocation2 + $0x18] sm:$0xf]
    %v35 = vld [vmem:[#allocation2 + $0x1c] sm:$0xf]
    %v36 = vld [vmem:[#allocation2 + $0x20] sm:$0xf]
    %v37 = vld [vmem:[#allocation2 + $0x24] sm:$0xf]
    %v38 = vld [vmem:[#allocation2 + $0x28] sm:$0xf]
    %v39 = vld [vmem:[#allocation2 + $0x2c] sm:$0xf]
    %v40 = vld [vmem:[#allocation2 + $0x30] sm:$0xf]
    %v41 = vld [vmem:[#allocation2 + $0x34] sm:$0xf]
    %v42 = vld [vmem:[#allocation2 + $0x38] sm:$0xf]
    %v43 = vld [vmem:[#allocation2 + $0x3c] sm:$0xf]
    %v44 = vld [vmem:[#allocation2 + $0x40] sm:$0x1]
    %v45 = vunpack.c.l.bf16 %v44
    %v46 = vld [vmem:[#allocation2 + $0x48] sm:$0xf]
    %v47 = vld [vmem:[#allocation2 + $0x4c] sm:$0xf]
    %v48 = vld [vmem:[#allocation2 + $0x50] sm:$0xf]
    %v49 = vld [vmem:[#allocation2 + $0x54] sm:$0xf]
    %v50 = vld [vmem:[#allocation2 + $0x58] sm:$0xf]
    %v51 = vld [vmem:[#allocation2 + $0x5c] sm:$0xf]
    %v52 = vld [vmem:[#allocation2 + $0x60] sm:$0xf]
    %v53 = vld [vmem:[#allocation2 + $0x64] sm:$0xf]
    %v54 = vld [vmem:[#allocation2 + $0x68] sm:$0xf]
    %v55 = vld [vmem:[#allocation2 + $0x6c] sm:$0xf]
    %v56 = vld [vmem:[#allocation2 + $0x70] sm:$0xf]
    %v57 = vld [vmem:[#allocation2 + $0x74] sm:$0xf]
    %v58 = vld [vmem:[#allocation2 + $0x78] sm:$0xf]
    %v59 = vld [vmem:[#allocation2 + $0x7c] sm:$0xf]
    %v60 = vld [vmem:[#allocation2 + $0x80] sm:$0xf]
    %v61 = vld [vmem:[#allocation2 + $0x84] sm:$0xf]
    %v62 = vld [vmem:[#allocation2 + $0x88] sm:$0x1]
    %v63 = vunpack.c.l.bf16 %v62
    %v64 = vld [vmem:[#allocation2 + $0x90] sm:$0xf]
    %v65 = vld [vmem:[#allocation2 + $0x94] sm:$0xf]
    %v66 = vld [vmem:[#allocation2 + $0x98] sm:$0xf]
    %v67 = vld [vmem:[#allocation2 + $0x9c] sm:$0xf]
    %v68 = vld [vmem:[#allocation2 + $0xa0] sm:$0xf]
    %v69 = vld [vmem:[#allocation2 + $0xa4] sm:$0xf]
    %v70 = vld [vmem:[#allocation2 + $0xa8] sm:$0xf]
    %v71 = vld [vmem:[#allocation2 + $0xac] sm:$0xf]
    %v72 = vld [vmem:[#allocation2 + $0xb0] sm:$0xf]
    %v73 = vld [vmem:[#allocation2 + $0xb4] sm:$0xf]
    %v74 = vld [vmem:[#allocation2 + $0xb8] sm:$0xf]
    %v75 = vld [vmem:[#allocation2 + $0xbc] sm:$0xf]
    %v76 = vld [vmem:[#allocation2 + $0xc0] sm:$0xf]
    %v77 = vld [vmem:[#allocation2 + $0xc4] sm:$0xf]
    %v78 = vld [vmem:[#allocation2 + $0xc8] sm:$0xf]
    %v79 = vld [vmem:[#allocation2 + $0xcc] sm:$0xf]
    %v80 = vld [vmem:[#allocation2 + $0xd0] sm:$0x1]
    %v81 = vunpack.c.l.bf16 %v80
    %v98 = vunpack.c.l.b16 %v28
    %v99 = vunpack.c.l.b16 %v29
    %v100 = vunpack.c.l.b16 %v30
    %v101 = vunpack.c.l.b16 %v31
    %v102 = vunpack.c.l.b16 %v32
    %v103 = vunpack.c.l.b16 %v33
    %v104 = vunpack.c.l.b16 %v34
    %v105 = vunpack.c.l.b16 %v35
    %v106 = vunpack.c.l.b16 %v36
    %v107 = vunpack.c.l.b16 %v37
    %v108 = vunpack.c.l.b16 %v38
    %v109 = vunpack.c.l.b16 %v39
    %v110 = vunpack.c.l.b16 %v40
    %v111 = vunpack.c.l.b16 %v41
    %v112 = vunpack.c.l.b16 %v42
    %v113 = vunpack.c.l.b16 %v43
    %v114 = vpack.c.b16 %v99, %v98
    %v115 = vpack.c.b16 %v101, %v100
    %v116 = vpack.c.b16 %v103, %v102
    %v117 = vpack.c.b16 %v105, %v104
    %v118 = vpack.c.b16 %v107, %v106
    %v119 = vpack.c.b16 %v109, %v108
    %v120 = vpack.c.b16 %v111, %v110
    %v121 = vpack.c.b16 %v113, %v112
    %130 = vmatprep.subr.bf16.mxu0 0
    %131 = vmatpush1.bf16.msra.mxu0 %v121
    %132 = vmatprep.subr.bf16.mxu0 0
    %133 = vmatpush1.bf16.msra.mxu0 %v120
    %134 = vmatprep.subr.bf16.mxu0 0
    %135 = vmatpush1.bf16.msra.mxu0 %v119
    %136 = vmatprep.subr.bf16.mxu0 0
    %137 = vmatpush1.bf16.msra.mxu0 %v118
    %138 = vmatprep.subr.bf16.mxu0 0
    %139 = vmatpush1.bf16.msra.mxu0 %v117
    %140 = vmatprep.subr.bf16.mxu0 0
    %141 = vmatpush1.bf16.msra.mxu0 %v116
    %142 = vmatprep.subr.bf16.mxu0 0
    %143 = vmatpush1.bf16.msra.mxu0 %v115
    %144 = vmatprep.subr.bf16.mxu0 0
    %145 = vmatpush1.bf16.msra.mxu0 %v114
    %146 = vmatprep.subr.bf16.mxu0 0
    %147 = vmatpush2.bf16.msra.mxu0 0
    %148 = vmatprep.subr.bf16.mxu0 0
    %149 = vmatpush2.bf16.msra.mxu0 0
    %150 = vmatprep.subr.bf16.mxu0 0
    %151 = vmatpush2.bf16.msra.mxu0 0
    %152 = vmatprep.subr.bf16.mxu0 0
    %153 = vmatpush2.bf16.msra.mxu0 0
    %154 = vmatprep.subr.bf16.mxu0 0
    %155 = vmatpush2.bf16.msra.mxu0 0
    %156 = vmatprep.subr.bf16.mxu0 0
    %157 = vmatpush2.bf16.msra.mxu0 0
    %158 = vmatprep.subr.bf16.mxu0 0
    %159 = vmatpush2.bf16.msra.mxu0 0
    %160 = vmatprep.subr.bf16.mxu0 0
    %161 = vmatpush2.bf16.msra.mxu0 0
    %162 = vmatprep.mubr.bf16.mxu0 0
    %163 = vmatmul.mubr.bf16.gmra.mxu0 %v27
    %v164 = vpop.f32.mrf.mxu0
    %v165 = vadd.f32 %v45, %v164
    %v166 = vpop.f32.mrf.mxu0
    %v167 = vpop.f32.mrf.mxu0
    %v168 = vpop.f32.mrf.mxu0
    %169 = vdwg.mxu0
    %v170 = vmax.f32 %v165, 0.0
    %v171 = vpack.c.bf16 %v170, %v170
    %v188 = vunpack.c.l.b16 %v46
    %v189 = vunpack.c.l.b16 %v47
    %v190 = vunpack.c.l.b16 %v48
    %v191 = vunpack.c.l.b16 %v49
    %v192 = vunpack.c.l.b16 %v50
    %v193 = vunpack.c.l.b16 %v51
    %v194 = vunpack.c.l.b16 %v52
    %v195 = vunpack.c.l.b16 %v53
    %v196 = vunpack.c.l.b16 %v54
    %v197 = vunpack.c.l.b16 %v55
    %v198 = vunpack.c.l.b16 %v56
    %v199 = vunpack.c.l.b16 %v57
    %v200 = vunpack.c.l.b16 %v58
    %v201 = vunpack.c.l.b16 %v59
    %v202 = vunpack.c.l.b16 %v60
    %v203 = vunpack.c.l.b16 %v61
    %v204 = vpack.c.b16 %v189, %v188
    %v205 = vpack.c.b16 %v191, %v190
    %v206 = vpack.c.b16 %v193, %v192
    %v207 = vpack.c.b16 %v195, %v194
    %v208 = vpack.c.b16 %v197, %v196
    %v209 = vpack.c.b16 %v199, %v198
    %v210 = vpack.c.b16 %v201, %v200
    %v211 = vpack.c.b16 %v203, %v202
    %220 = vmatprep.subr.bf16.mxu0 0
    %221 = vmatpush1.bf16.msra.mxu0 %v211
    %222 = vmatprep.subr.bf16.mxu0 0
    %223 = vmatpush1.bf16.msra.mxu0 %v210
    %224 = vmatprep.subr.bf16.mxu0 0
    %225 = vmatpush1.bf16.msra.mxu0 %v209
    %226 = vmatprep.subr.bf16.mxu0 0
    %227 = vmatpush1.bf16.msra.mxu0 %v208
    %228 = vmatprep.subr.bf16.mxu0 0
    %229 = vmatpush1.bf16.msra.mxu0 %v207
    %230 = vmatprep.subr.bf16.mxu0 0
    %231 = vmatpush1.bf16.msra.mxu0 %v206
    %232 = vmatprep.subr.bf16.mxu0 0
    %233 = vmatpush1.bf16.msra.mxu0 %v205
    %234 = vmatprep.subr.bf16.mxu0 0
    %235 = vmatpush1.bf16.msra.mxu0 %v204
    %236 = vmatprep.subr.bf16.mxu0 0
    %237 = vmatpush2.bf16.msra.mxu0 0
    %238 = vmatprep.subr.bf16.mxu0 0
    %239 = vmatpush2.bf16.msra.mxu0 0
    %240 = vmatprep.subr.bf16.mxu0 0
    %241 = vmatpush2.bf16.msra.mxu0 0
    %242 = vmatprep.subr.bf16.mxu0 0
    %243 = vmatpush2.bf16.msra.mxu0 0
    %244 = vmatprep.subr.bf16.mxu0 0
    %245 = vmatpush2.bf16.msra.mxu0 0
    %246 = vmatprep.subr.bf16.mxu0 0
    %247 = vmatpush2.bf16.msra.mxu0 0
    %248 = vmatprep.subr.bf16.mxu0 0
    %249 = vmatpush2.bf16.msra.mxu0 0
    %250 = vmatprep.subr.bf16.mxu0 0
    %251 = vmatpush2.bf16.msra.mxu0 0
    %252 = vmatprep.mubr.bf16.mxu0 0
    %253 = vmatmul.mubr.bf16.gmra.mxu0 %v171
    %v254 = vpop.f32.mrf.mxu0
    %v255 = vadd.f32 %v63, %v254
    %v256 = vpop.f32.mrf.mxu0
    %v257 = vpop.f32.mrf.mxu0
    %v258 = vpop.f32.mrf.mxu0
    %259 = vdwg.mxu0
    %v260 = vmax.f32 %v255, 0.0
    %v261 = vpack.c.bf16 %v260, %v260
    %v278 = vunpack.c.l.b16 %v64
    %v279 = vunpack.c.l.b16 %v65
    %v280 = vunpack.c.l.b16 %v66
    %v281 = vunpack.c.l.b16 %v67
    %v282 = vunpack.c.l.b16 %v68
    %v283 = vunpack.c.l.b16 %v69
    %v284 = vunpack.c.l.b16 %v70
    %v285 = vunpack.c.l.b16 %v71
    %v286 = vunpack.c.l.b16 %v72
    %v287 = vunpack.c.l.b16 %v73
    %v288 = vunpack.c.l.b16 %v74
    %v289 = vunpack.c.l.b16 %v75
    %v290 = vunpack.c.l.b16 %v76
    %v291 = vunpack.c.l.b16 %v77
    %v292 = vunpack.c.l.b16 %v78
    %v293 = vunpack.c.l.b16 %v79
    %v294 = vpack.c.b16 %v279, %v278
    %v295 = vpack.c.b16 %v281, %v280
    %v296 = vpack.c.b16 %v283, %v282
    %v297 = vpack.c.b16 %v285, %v284
    %v298 = vpack.c.b16 %v287, %v286
    %v299 = vpack.c.b16 %v289, %v288
    %v300 = vpack.c.b16 %v291, %v290
    %v301 = vpack.c.b16 %v293, %v292
    %310 = vmatprep.subr.bf16.mxu0 0
    %311 = vmatpush1.bf16.msra.mxu0 %v301
    %312 = vmatprep.subr.bf16.mxu0 0
    %313 = vmatpush1.bf16.msra.mxu0 %v300
    %314 = vmatprep.subr.bf16.mxu0 0
    %315 = vmatpush1.bf16.msra.mxu0 %v299
    %316 = vmatprep.subr.bf16.mxu0 0
    %317 = vmatpush1.bf16.msra.mxu0 %v298
    %318 = vmatprep.subr.bf16.mxu0 0
    %319 = vmatpush1.bf16.msra.mxu0 %v297
    %320 = vmatprep.subr.bf16.mxu0 0
    %321 = vmatpush1.bf16.msra.mxu0 %v296
    %322 = vmatprep.subr.bf16.mxu0 0
    %323 = vmatpush1.bf16.msra.mxu0 %v295
    %324 = vmatprep.subr.bf16.mxu0 0
    %325 = vmatpush1.bf16.msra.mxu0 %v294
    %326 = vmatprep.subr.bf16.mxu0 0
    %327 = vmatpush2.bf16.msra.mxu0 0
    %328 = vmatprep.subr.bf16.mxu0 0
    %329 = vmatpush2.bf16.msra.mxu0 0
    %330 = vmatprep.subr.bf16.mxu0 0
    %331 = vmatpush2.bf16.msra.mxu0 0
    %332 = vmatprep.subr.bf16.mxu0 0
    %333 = vmatpush2.bf16.msra.mxu0 0
    %334 = vmatprep.subr.bf16.mxu0 0
    %335 = vmatpush2.bf16.msra.mxu0 0
    %336 = vmatprep.subr.bf16.mxu0 0
    %337 = vmatpush2.bf16.msra.mxu0 0
    %338 = vmatprep.subr.bf16.mxu0 0
    %339 = vmatpush2.bf16.msra.mxu0 0
    %340 = vmatprep.subr.bf16.mxu0 0
    %341 = vmatpush2.bf16.msra.mxu0 0
    %342 = vmatprep.mubr.bf16.mxu0 0
    %343 = vmatmul.mubr.bf16.gmra.mxu0 %v261
    %v344 = vpop.f32.mrf.mxu0
    %v345 = vadd.f32 %v81, %v344
    %v346 = vpop.f32.mrf.mxu0
    %v347 = vpop.f32.mrf.mxu0
    %v348 = vpop.f32.mrf.mxu0
    %349 = vdwg.mxu0
    %350 = vst [vmem:[#allocation5] sm:$0x1] %v345
    // Predicated region
    $region14: #{forward.1} parent=1 // pred_check
      _
    $region15: #{forward.1} parent=1 // pred_check_branch
      %352 = sbr.rel (0) target = $region17
    $region16: #{forward.1} parent=1 // pred_region
      %s354 = ssub.s32 16, 16
      %355 = vsyncadd [#allocation4], %s354
      %s357 = sshll.u32 [#allocation5], 4
      %s358 = int_to_ptr.vmem [resolvable:$true] %s357
      %360 = dma.vmem_to_hbm [thread:$0]  %s358, 16, %s2, [#allocation4]
    $region17: #{forward.1} parent=1 // pred_fallthru
      _
    // Predicated region
    $region18: #{forward.1} parent=1 // pred_check
      _
    $region19: #{forward.1} parent=1 // pred_check_branch
      %362 = sbr.rel (0) target = $region21
    $region20: #{forward.1} parent=1 // pred_region
      %363 = dma.done [#allocation4], 16
    $region21: #{forward.1} parent=1 // pred_fallthru
      _
    %364 = vsyncpa [#allocation3], 1
    %365 = vsyncpa [#allocation4], 1

</llo_original>
